<compile_context>
chip_gen: v7x
topology: tpu7x:2x2x1
jax: 0.10.0
libtpu: 0.0.40
codegen_flags: <defaults>
</compile_context>

<pallas_src>
import functools

import numpy as np
import jax
import jax.numpy as jnp
from jax.experimental import pallas as pl
from jax.experimental.pallas import tpu as pltpu


# --------------------------------------------------------------------------- #
# Kernel 1: gather the unique bias rows, heads-major.
#   bias[n, m] = table_t[n, idx[m]]    (exact 0/1 selection via tiny matmul)
# --------------------------------------------------------------------------- #
def _gather_kernel(table_t_ref, idx_ref, bias_ref):
    T = table_t_ref.shape[1]          # (2h-1)*(2w-1)
    M2 = idx_ref.shape[1]             # hw*hw
    iota_t = jax.lax.broadcasted_iota(jnp.int32, (T, M2), 0)
    onehot = (iota_t == idx_ref[...]).astype(jnp.float32)        # (T, M2)
    bias_ref[...] = jnp.dot(
        table_t_ref[...], onehot,                                # (nh, T) @ (T, M2)
        precision=jax.lax.Precision.HIGHEST,                     # exact selection
        preferred_element_type=jnp.float32,
    )


# --------------------------------------------------------------------------- #
# Kernel 2: store-bound replication into the final layout.
#   row_ref: (t_g, 1, L) lane-dense unique rows (rw repeat already baked in)
#   out_ref: (t_g, t_rh, L)  -> pure sublane broadcast, unmasked lane-dense
#   stores.
# --------------------------------------------------------------------------- #
def _expand_kernel(row_ref, out_ref):
    out_ref[...] = jnp.broadcast_to(row_ref[...], out_ref.shape)


# --------------------------------------------------------------------------- #
# Tiling helpers
# --------------------------------------------------------------------------- #
def _block_byte_budget():
    """Per-output-block byte target, derived from the chip's VMEM when the
    query is available (falls back to the v7x per-TC 64 MiB)."""
    vmem = None
    try:
        info = pltpu.get_tpu_info()
        for attr in ("vmem_capacity_bytes", "vmem_bytes", "vmem_size_bytes"):
            v = getattr(info, attr, None)
            if isinstance(v, int) and v > 0:
                vmem = v
                break
    except Exception:
        pass
    if vmem is None:
        vmem = 64 << 20
    # ~vmem/8 per block so (2x double-buffered output + resident input) stays
    # well inside every generation's scoped limit; cap at 8 MiB.
    return int(min(8 << 20, max(2 << 20, vmem // 8)))


def _pick_tiles(G, rh, L, budget_bytes, itemsize=4):
    """Pick (t_g, t_rh) for the (G, rh, L) output: lane axis always full L,
    t_rh a multiple of 8 (or full rh), block sized toward budget, and the grid
    kept at >= 2 steps when the problem allows it (dual-TC / megacore)."""
    row_bytes = L * itemsize
    if rh * row_bytes <= budget_bytes or rh % 8 != 0:
        t_rh = rh
    else:
        t_rh = rh  # forced fallback if no multiple-of-8 divisor fits
        d = 8
        while d < rh:
            if rh % d == 0 and d * row_bytes <= budget_bytes:
                t_rh = d
            d += 8

    block_bytes = t_rh * row_bytes
    n_r = rh // t_rh
    t_g = 1
    for d in range(2, G + 1):
        if G % d:
            continue
        if d * block_bytes > budget_bytes:
            break
        if (G // d) * n_r < 2 <= G * n_r:
            continue   # don't collapse a shardable grid to a single step
        t_g = d
    return t_g, t_rh


# --------------------------------------------------------------------------- #
# Forward
# --------------------------------------------------------------------------- #
def _rpb_forward(table_t, idx_flat, *, num_heads, h, w, H, W, budget_bytes):
    hw = h * w
    rh, rw = H // h, W // w
    G = num_heads * h
    M2 = hw * hw
    L = w * rw * hw

    # ---- kernel 1: unique bias rows, heads-major, lane-dense ---------------
    bias_t = pl.pallas_call(
        _gather_kernel,
        out_shape=jax.ShapeDtypeStruct((num_heads, M2), jnp.float32),
    )(table_t, idx_flat)

    # ---- tiny wrapper op: bake the rw lane-repeat into a lane-dense row ----
    # bias_row[g, 0, b*rw*hw + v*hw + k] = table[idx[a*w + b, k], n],  g = n*h+a
    bias5 = bias_t.reshape(G, 1, w, 1, hw)
    bias_row = jnp.broadcast_to(bias5, (G, 1, w, rw, hw)).reshape(G, 1, L)

    # ---- kernel 2: store-bound sublane broadcast into the final layout -----
    t_g, t_rh = _pick_tiles(G, rh, L, budget_bytes)
    grid = (G // t_g, rh // t_rh)

    out_bytes = G * rh * L * 4
    in_bytes = G * L * 4                      # input block is resident across r
    out_block_bytes = t_g * t_rh * L * 4
    in_block_bytes = t_g * L * 4
    needed = 2 * out_block_bytes + 2 * in_block_bytes + (1 << 20)
    vmem_limit = int(max(needed, 32 << 20))   # >= v5e's 16 MiB scoped default

    out3 = pl.pallas_call(
        _expand_kernel,
        out_shape=jax.ShapeDtypeStruct((G, rh, L), jnp.float32),
        grid=grid,
        in_specs=[pl.BlockSpec((t_g, 1, L), lambda g, r: (g, 0, 0))],
        out_specs=pl.BlockSpec((t_g, t_rh, L), lambda g, r: (g, r, 0)),
        compiler_params=pltpu.CompilerParams(
            dimension_semantics=("parallel", "parallel"),
            vmem_limit_bytes=vmem_limit),
        cost_estimate=pl.CostEstimate(
            flops=0, transcendentals=0, bytes_accessed=out_bytes + in_bytes),
    )(bias_row)

    # (nh*h, rh, w*rw*hw) flat order is n, a, u, b, v, k which equals the flat
    # order of (nh, H*W, hw) with i = a*rh + u, j = b*rw + v  ->  free reshape.
    return out3.reshape(num_heads, H * W, hw)[None]


class RelativePositionBias:
    """JAX/Pallas port of the PyTorch RelativePositionBias module."""

    def __init__(self, num_heads, h, w, key):
        self.num_heads = num_heads
        self.h = h
        self.w = w
        self.table_size = (2 * h - 1) * (2 * w - 1)

        # parameter init mirrors torch.randn(...) * 0.02
        self.relative_position_bias_table = (
            jax.random.normal(key, (self.table_size, num_heads), jnp.float32) * 0.02
        )
        # heads-major copy for the kernel (tiny; built once at init)
        self._table_t = jnp.transpose(self.relative_position_bias_table)

        # relative_position_index buffer — same integer math as the torch __init__
        coords_h = np.arange(h)
        coords_w = np.arange(w)
        coords = np.stack(np.meshgrid(coords_h, coords_w, indexing="ij"))   # (2, h, w)
        coords_flatten = coords.reshape(2, -1)                              # (2, hw)
        rel = coords_flatten[:, :, None] - coords_flatten[:, None, :]       # (2, hw, hw)
        rel = rel.transpose(1, 2, 0).copy()                                 # (hw, hw, 2)
        rel[:, :, 0] += h - 1
        rel[:, :, 1] += w - 1
        rel[:, :, 0] *= 2 * h - 1   # exactly as the reference module
        self.relative_position_index = rel.sum(-1).astype(np.int32)         # (hw, hw)

        # The torch module only guarantees in-range indices for h == w; its
        # gather would raise otherwise, so fail loudly here instead of
        # silently producing zeros from the one-hot selection.
        if int(self.relative_position_index.max()) >= self.table_size:
            raise ValueError("relative_position_index exceeds the bias table; "
                             "the reference module only supports h == w safely")

        self._idx_flat = jnp.asarray(
            self.relative_position_index.reshape(1, -1), jnp.int32)         # (1, hw*hw)

        self._budget_bytes = _block_byte_budget()
        self._fwd_cache = {}

    def __call__(self, H, W):
        assert H % self.h == 0 and W % self.w == 0, "H, W must be multiples of h, w"
        fn = self._fwd_cache.get((H, W))
        if fn is None:
            fn = jax.jit(functools.partial(
                _rpb_forward,
                num_heads=self.num_heads, h=self.h, w=self.w, H=H, W=W,
                budget_bytes=self._budget_bytes))
            self._fwd_cache[(H, W)] = fn
        return fn(self._table_t, self._idx_flat)


def _reference(module, H, W):
    """Pure-JAX replica of the torch forward, for verification."""
    h, w, nh = module.h, module.w, module.num_heads
    hw = h * w
    table = module.relative_position_bias_table
    idx = jnp.asarray(module.relative_position_index.reshape(-1))
    bias = table[idx].reshape(h, w, hw, nh)
    bias = jnp.repeat(bias, H // h, axis=0)
    bias = jnp.repeat(bias, W // w, axis=1)
    bias = bias.reshape(H * W, hw, nh)
    return jnp.transpose(bias, (2, 0, 1))[None]


if __name__ == "__main__":
    key = jax.random.PRNGKey(0)
    num_heads, h, w = 4, 4, 4       # module config
    module = RelativePositionBias(num_heads, h, w, key)

    for (H, W) in [(4, 4), (8, 8), (16, 8), (16, 16)]:   # multiples of (h, w)
        out = jax.block_until_ready(module(H, W))
        assert out.shape == (1, num_heads, H * W, h * w)
        ref = _reference(module, H, W)
        np.testing.assert_allclose(np.asarray(out), np.asarray(ref),
                                   rtol=1e-5, atol=1e-6)

    print("KERNEL_OK")
</pallas_src>

<mosaic_0001>
module attributes {stable_mosaic.version = 11 : i64} {
  func.func @_expand_kernel(%arg0: i32, %arg1: i32, %arg2: memref<8x1x64xf32, #tpu.memory_space<vmem>>, %arg3: memref<8x1x64xf32, #tpu.memory_space<vmem>>) attributes {dimension_semantics = [#tpu.dimension_semantics<parallel>, #tpu.dimension_semantics<parallel>], iteration_bounds = array<i64: 2, 1>, scalar_prefetch = 0 : i64, scratch_operands = 0 : i64, tpu.core_type = #tpu.core_type<tc>, window_params = [{transform_indices = @transform_0, window_bounds = array<i64: 8, 1, 64>}, {transform_indices = @transform_1, window_bounds = array<i64: 8, 1, 64>}]} {
    %c0 = arith.constant 0 : index
    %c0_0 = arith.constant 0 : index
    %c0_1 = arith.constant 0 : index
    %0 = vector.load %arg2[%c0, %c0_0, %c0_1] : memref<8x1x64xf32, #tpu.memory_space<vmem>>, vector<8x1x64xf32>
    %c0_2 = arith.constant 0 : index
    %c0_3 = arith.constant 0 : index
    %c0_4 = arith.constant 0 : index
    %1 = vector.load %arg3[%c0_2, %c0_3, %c0_4] : memref<8x1x64xf32, #tpu.memory_space<vmem>>, vector<8x1x64xf32>
    tpu.vector_store %arg3[%c0_2, %c0_3, %c0_4], %0 {strides = array<i32>} : memref<8x1x64xf32, #tpu.memory_space<vmem>>, vector<8x1x64xf32>,
    return
  }
  func.func @transform_0(%arg0: i32, %arg1: i32) -> (i32, i32, i32) {
    %c0_i32 = arith.constant 0 : i32
    %c0_i32_0 = arith.constant 0 : i32
    %c0_i32_1 = arith.constant 0 : i32
    return %arg0, %c0_i32, %c0_i32_0 : i32, i32, i32
  }
  func.func @transform_1(%arg0: i32, %arg1: i32) -> (i32, i32, i32) {
    %c0_i32 = arith.constant 0 : i32
    %c0_i32_0 = arith.constant 0 : i32
    return %arg0, %arg1, %c0_i32 : i32, i32, i32
  }
}

module attributes {stable_mosaic.version = 11 : i64} {
  func.func @_gather_kernel(%arg0: memref<4x49xf32, #tpu.memory_space<vmem>>, %arg1: memref<1x256xi32, #tpu.memory_space<vmem>>, %arg2: memref<4x256xf32, #tpu.memory_space<vmem>>) attributes {dimension_semantics = [], scalar_prefetch = 0 : i64, scratch_operands = 0 : i64, tpu.core_type = #tpu.core_type<tc>} {
    %0 = tpu.iota {dimensions = array<i32: 0>} : vector<49x256xi32>
    %c0 = arith.constant 0 : index
    %c0_0 = arith.constant 0 : index
    %1 = vector.load %arg1[%c0, %c0_0] : memref<1x256xi32, #tpu.memory_space<vmem>>, vector<1x256xi32>
    %2 = vector.broadcast %1 : vector<1x256xi32> to vector<49x256xi32>
    %3 = arith.cmpi eq, %0, %2 : vector<49x256xi32>
    %4 = arith.extui %3 : vector<49x256xi1> to vector<49x256xi32>
    %5 = arith.sitofp %4 : vector<49x256xi32> to vector<49x256xf32>
    %c0_1 = arith.constant 0 : index
    %c0_2 = arith.constant 0 : index
    %6 = vector.load %arg0[%c0_1, %c0_2] : memref<4x49xf32, #tpu.memory_space<vmem>>, vector<4x49xf32>
    %cst = arith.constant dense<0.000000e+00> : vector<4x256xf32>
    %7 = tpu.matmul %6, %5, %cst {dimension_numbers = #tpu.dot_dimension_numbers<[1], [0], [0], [1], [0, 0, 1, 1], [], []>, precision = #tpu.contract_precision<fp32>} : vector<4x49xf32>, vector<49x256xf32>, vector<4x256xf32> -> vector<4x256xf32>
    %c0_3 = arith.constant 0 : index
    %c0_4 = arith.constant 0 : index
    %8 = vector.load %arg2[%c0_3, %c0_4] : memref<4x256xf32, #tpu.memory_space<vmem>>, vector<4x256xf32>
    tpu.vector_store %arg2[%c0_3, %c0_4], %7 {strides = array<i32>} : memref<4x256xf32, #tpu.memory_space<vmem>>, vector<4x256xf32>,
    return
  }
}

</mosaic_0001>

<llo_original>
// kernel: _rpb_forward.3
$region0: #{_rpb_forward.3}
  #allocation0 [shape = 'u32[]', space=smem, size = 0x4, offset = 0x4, fixed_abs, tag = 'smem constant byte address 0x4 - core index']
  #allocation1 [shape = 'u32[144,128]{1,0:T(1,128)}', space=vmem, size = 0x12000, scoped, tag = 'internal scratch']
  %s0 = inlined_call_operand.vmem [shape: f32[16,1,64], index: 0, kind: input, shape index: {}]
  %s1 = inlined_call_operand.vmem [shape: f32[16,1,64], index: 1, kind: output, shape index: {}]
  %s2 = sld [smem:[#allocation0]]
  $region37: #{_rpb_forward.3} parent=0
    _
  %s4 = ssub.s32 1, %s2
  %s5 = scalar_select 0, %s4, %s2
  loop: start=0, step=1, limit=4
  $region2: #{_rpb_forward.3} parent=0 // loop_pre_header
    _
  $region3: #{_rpb_forward.3} parent=0 // loop_header
    %s7 = sphi 0, %s11
    %p8 = scmp.ge.s32.totalorder %s7, 4
    %s14 = sphi 0, %s26
    %s15 = sphi 0, %s22
    %s16 = sphi 0, %s14
    %s17 = sphi 0, %s15
    %s18 = sphi 0, %s16
    %s19 = sphi 0, %s17
    %s29 = sphi 0, %s31
    %s32 = sphi 0, %s29
    %s33 = sphi 0, %s32
    %s49 = sphi 0, %s33
    %s57 = sphi 0, %s59
    %s60 = sphi 0, %s57
    %s61 = sphi 0, %s60
    %s77 = sphi 0, %s61
  $region4: #{_rpb_forward.3} parent=0 // loop_header_branch
    %10 = sbr.rel (%p8) target = $region8
  $region5: #{_rpb_forward.3} parent=0 // loop_body
    %s12 = ssub.s32 %s7, 1
    %s13 = ssub.s32 %s7, 2
    %s20 = sadd.s32 1, %s15
    %p21 = scmp.ge.s32.totalorder %s20, 1
    %s22 = scalar_select %p21, 0, %s20
    %s23 = sadd.s32 1, %s14
    %s24 = scalar_select %p21, %s23, %s14
    %p25 = scmp.ge.s32.totalorder %s24, 2
    %s26 = scalar_select %p25, 0, %s24
    %s27 = ssub.s32 %s14, %s26
    %p28 = scmp.eq.s32.totalorder %s27, 0
    %s30 = sadd.s32 %s29, 1
    %s31 = scalar_select %p28, %s29, %s30
    %p34 = pneg %p28
    %p35 = scmp.eq.s32.totalorder %s7, 1
    %p36 = por %p34, %p35
    %p37 = scmp.ne.s32.totalorder %s29, %s32
    %p38 = scmp.eq.s32.totalorder %s7, 0
    %p39 = por %p37, %p38
    %p40 = scmp.ne.s32.totalorder %s29, %s32
    %p41 = scmp.eq.s32.totalorder %s12, 1
    %p42 = por %p40, %p41
    %p43 = scmp.ne.s32.totalorder %s32, %s33
    %p44 = scmp.eq.s32.totalorder %s12, 0
    %p45 = por %p43, %p44
    %p46 = scmp.ne.s32.totalorder %s32, %s33
    %p47 = scmp.eq.s32.totalorder %s13, 1
    %p48 = por %p46, %p47
    %p50 = scmp.ne.s32.totalorder %s33, %s49
    %p51 = scmp.eq.s32.totalorder %s13, 0
    %p52 = por %p50, %p51
    %s53 = ssub.s32 %s14, %s26
    %s54 = ssub.s32 %s15, %s22
    %s55 = sor.u32 %s53, %s54
    %p56 = scmp.eq.s32.totalorder %s55, 0
    %s58 = sadd.s32 %s57, 1
    %s59 = scalar_select %p56, %s57, %s58
    %p62 = pneg %p56
    %p63 = scmp.eq.s32.totalorder %s7, 1
    %p64 = por %p62, %p63
    %p65 = scmp.ne.s32.totalorder %s57, %s60
    %p66 = scmp.eq.s32.totalorder %s7, 0
    %p67 = por %p65, %p66
    %p68 = scmp.ne.s32.totalorder %s57, %s60
    %p69 = scmp.eq.s32.totalorder %s12, 1
    %p70 = por %p68, %p69
    %p71 = scmp.ne.s32.totalorder %s60, %s61
    %p72 = scmp.eq.s32.totalorder %s12, 0
    %p73 = por %p71, %p72
    %p74 = scmp.ne.s32.totalorder %s60, %s61
    %p75 = scmp.eq.s32.totalorder %s13, 1
    %p76 = por %p74, %p75
    %p78 = scmp.ne.s32.totalorder %s61, %s77
    %p79 = scmp.eq.s32.totalorder %s13, 0
    %p80 = por %p78, %p79
    %p81 = scmp.le.s32.totalorder 1, %s7
    %p82 = scmp.lt.s32.totalorder %s7, 3
    %p83 = pnand %p81, %p82
    %p84 = pneg %p83
    // Predicated region
    $region9: #{_rpb_forward.3} parent=5 // pred_check
      _
    $region10: #{_rpb_forward.3} parent=5 // pred_check_branch
      %86 = sbr.rel (%p83) target = $region12
    $region11: #{_rpb_forward.3} parent=5 // pred_region
      %s87 = ssub.s32 %s7, 1
    $region12: #{_rpb_forward.3} parent=5 // pred_fallthru
      _
    %p88 = scmp.lt.s32.totalorder %s7, 2
    // Predicated region
    $region13: #{_rpb_forward.3} parent=5 // pred_check
      %p89 = pneg %p88
    $region14: #{_rpb_forward.3} parent=5 // pred_check_branch
      %91 = sbr.rel (%p89) target = $region16
    $region15: #{_rpb_forward.3} parent=5 // pred_region
      // Predicated region
      $region17: #{_rpb_forward.3} parent=15 // pred_check
        %p92 = pneg %p39
      $region18: #{_rpb_forward.3} parent=15 // pred_check_branch
        %94 = sbr.rel (%p92) target = $region20
      $region19: #{_rpb_forward.3} parent=15 // pred_region
        %s95 = smul.u32 8, %s14
        %p96 = scmp.lt.s32.totalorder %s95, 15
        %s97 = scalar_select %p96, %s95, 15
        %s98 = scalar_lea.vmem %s0, %s97
        %s99 = smul.u32 8, %s14
      $region20: #{_rpb_forward.3} parent=15 // pred_fallthru
        _
    $region16: #{_rpb_forward.3} parent=5 // pred_fallthru
      _
    %p100 = scmp.le.s32.totalorder 1, %s7
    %p101 = scmp.lt.s32.totalorder %s7, 3
    %p102 = pnand %p100, %p101
    %p103 = pneg %p102
    // Predicated region
    $region21: #{_rpb_forward.3} parent=5 // pred_check
      _
    $region22: #{_rpb_forward.3} parent=5 // pred_check_branch
      %105 = sbr.rel (%p102) target = $region24
    $region23: #{_rpb_forward.3} parent=5 // pred_region
      %s106 = ssub.s32 %s7, 1
      %s107 = smul.u32 8, %s16
      %p108 = scmp.lt.s32.totalorder %s107, 15
      %s109 = scalar_select %p108, %s107, 15
      %s110 = scalar_lea.vmem %s0, %s109
      %p111 = pneg %p45
      %p112 = pneg %p42
      %p113 = pneg %p73
      %p114 = pneg %p70
      %s115 = smul.u32 8, %s16
      %p116 = scmp.lt.s32.totalorder %s115, 15
      %s117 = scalar_select %p116, %s115, 15
      %p118 = scmp.lt.s32.totalorder %s17, 0
      %s119 = scalar_select %p118, %s17, 0
      %s120 = sadd.s32 %s119, %s117
      %s121 = scalar_lea.vmem %s1, %s120
      %s122 = smul.u32 8, %s16
      %p123 = scmp.lt.s32.totalorder %s122, 15
      %s124 = scalar_select %p123, %s122, 15
      %s125 = scalar_lea.vmem %s0, %s124
      %s126 = smul.u32 8, %s16
      %s127 = smul.u32 8, %s16
      %p128 = scmp.lt.s32.totalorder %s127, 15
      %s129 = scalar_select %p128, %s127, 15
      %p130 = scmp.lt.s32.totalorder %s17, 0
      %s131 = scalar_select %p130, %s17, 0
      %s132 = sadd.s32 %s131, %s129
      %s133 = scalar_lea.vmem %s1, %s132
      %s134 = smul.u32 8, %s16
      %v135 = vld [vmem:[%s125] sm:$0x1]
      %v136 = vld [vmem:[%s125 + $0x1] sm:$0x1]
      %v137 = vld [vmem:[%s125 + $0x2] sm:$0x1]
      %v138 = vld [vmem:[%s125 + $0x3] sm:$0x1]
      %v139 = vld [vmem:[%s125 + $0x4] sm:$0x1]
      %v140 = vld [vmem:[%s125 + $0x5] sm:$0x1]
      %v141 = vld [vmem:[%s125 + $0x6] sm:$0x1]
      %v142 = vld [vmem:[%s125 + $0x7] sm:$0x1]
      %vm143 = vcmask 516096
      %144 = vst.msk [vmem:[%s133] sm:$0x1] %vm143, %v135
      %145 = vst.msk [vmem:[%s133 + $0x1] sm:$0x1] %vm143, %v136
      %146 = vst.msk [vmem:[%s133 + $0x2] sm:$0x1] %vm143, %v137
      %147 = vst.msk [vmem:[%s133 + $0x3] sm:$0x1] %vm143, %v138
      %148 = vst.msk [vmem:[%s133 + $0x4] sm:$0x1] %vm143, %v139
      %149 = vst.msk [vmem:[%s133 + $0x5] sm:$0x1] %vm143, %v140
      %150 = vst.msk [vmem:[%s133 + $0x6] sm:$0x1] %vm143, %v141
      %151 = vst.msk [vmem:[%s133 + $0x7] sm:$0x1] %vm143, %v142
      %s152 = smul.u32 8, %s16
      %p153 = scmp.lt.s32.totalorder %s152, 15
      %s154 = scalar_select %p153, %s152, 15
      %p155 = scmp.lt.s32.totalorder %s17, 0
      %s156 = scalar_select %p155, %s17, 0
      %s157 = sadd.s32 %s156, %s154
      %s158 = scalar_lea.vmem %s1, %s157
      // Predicated region
      $region25: #{_rpb_forward.3} parent=23 // pred_check
        %p159 = pneg %p70
      $region26: #{_rpb_forward.3} parent=23 // pred_check_branch
        %161 = sbr.rel (%p159) target = $region28
      $region27: #{_rpb_forward.3} parent=23 // pred_region
        %s162 = smul.u32 8, %s16
      $region28: #{_rpb_forward.3} parent=23 // pred_fallthru
        _
    $region24: #{_rpb_forward.3} parent=5 // pred_fallthru
      _
    %p163 = scmp.le.s32.totalorder 2, %s7
    // Predicated region
    $region29: #{_rpb_forward.3} parent=5 // pred_check
      %p164 = pneg %p163
    $region30: #{_rpb_forward.3} parent=5 // pred_check_branch
      %166 = sbr.rel (%p164) target = $region32
    $region31: #{_rpb_forward.3} parent=5 // pred_region
      %s167 = ssub.s32 %s7, 2
      // Predicated region
      $region33: #{_rpb_forward.3} parent=31 // pred_check
        %p168 = pneg %p76
      $region34: #{_rpb_forward.3} parent=31 // pred_check_branch
        %170 = sbr.rel (%p168) target = $region36
      $region35: #{_rpb_forward.3} parent=31 // pred_region
        %s171 = smul.u32 8, %s18
        %p172 = scmp.lt.s32.totalorder %s171, 15
        %s173 = scalar_select %p172, %s171, 15
        %p174 = scmp.lt.s32.totalorder %s19, 0
        %s175 = scalar_select %p174, %s19, 0
        %s176 = sadd.s32 %s175, %s173
        %s177 = scalar_lea.vmem %s1, %s176
      $region36: #{_rpb_forward.3} parent=31 // pred_fallthru
        _
    $region32: #{_rpb_forward.3} parent=5 // pred_fallthru
      _
  $region6: #{_rpb_forward.3} parent=0 // loop_footer
    %s11 = sadd.s32 1, %s7
  $region7: #{_rpb_forward.3} parent=0 // loop_footer_branch
    %6 = sbr.rel target = $region3
  $region8: #{_rpb_forward.3} parent=0 // loop_exit
    _

// kernel: _rpb_forward.2
$region0: #{_rpb_forward.2}
  #allocation0 [shape = 'u32[]', space=smem, size = 0x4, offset = 0x4, fixed_abs, tag = 'smem constant byte address 0x4 - core index']
  #allocation1 [shape = 'u32[144,128]{1,0:T(1,128)}', space=vmem, size = 0x12000, scoped, tag = 'internal scratch']
  %s0 = inlined_call_operand.hbm [shape: f32[4,49], index: 0, kind: input, shape index: {}]
  %s1 = inlined_call_operand.vmem [shape: s32[1,256], index: 1, kind: input, shape index: {}]
  %s2 = inlined_call_operand.vmem [shape: f32[4,256], index: 2, kind: output, shape index: {}]
  %s3 = sld [smem:[#allocation0]]
  $region22: #{_rpb_forward.2} parent=0
    _
  %s5 = ssub.s32 1, %s3
  %s6 = scalar_select 0, %s5, %s3
  $region1: #{_rpb_forward.2} parent=0
    #allocation2 [shape = 'u8[2048]{0}', space=vmem, size = 0x800, scoped, tag = 'input window, operand 0, single buffered']
    #allocation3 [shape = 's32[1]{0}', space=sflag, size = 0x4, scoped, tag = 'scoped memory for _rpb_forward.2']
    %7 = vsyncpa [#allocation3], 0
    // Predicated region
    $region2: #{_rpb_forward.2} parent=1 // pred_check
      _
    $region3: #{_rpb_forward.2} parent=1 // pred_check_branch
      %9 = sbr.rel (0) target = $region5
    $region4: #{_rpb_forward.2} parent=1 // pred_region
      %s11 = ssub.s32 64, 64
      %12 = vsyncadd [#allocation3], %s11
      %s14 = sshll.u32 [#allocation2], 4
      %s15 = int_to_ptr.vmem [resolvable:$true] %s14
      %17 = dma.hbm_to_vmem [thread:$0]  %s0, 64, %s15, [#allocation3]
    $region5: #{_rpb_forward.2} parent=1 // pred_fallthru
      _
    // Predicated region
    $region6: #{_rpb_forward.2} parent=1 // pred_check
      _
    $region7: #{_rpb_forward.2} parent=1 // pred_check_branch
      %19 = sbr.rel (0) target = $region9
    $region8: #{_rpb_forward.2} parent=1 // pred_region
      _
    $region9: #{_rpb_forward.2} parent=1 // pred_fallthru
      _
    // Predicated region
    $region10: #{_rpb_forward.2} parent=1 // pred_check
      _
    $region11: #{_rpb_forward.2} parent=1 // pred_check_branch
      %21 = sbr.rel (0) target = $region13
    $region12: #{_rpb_forward.2} parent=1 // pred_region
      %22 = dma.done [#allocation3], 64
    $region13: #{_rpb_forward.2} parent=1 // pred_fallthru
      _
    %v23 = vlaneseq
    %v24 = vshrl.u32 %v23, 7
    %v25 = vadd.s32 %v24, 8
    %v26 = vadd.s32 %v24, 16
    %v27 = vadd.s32 %v24, 24
    %v28 = vadd.s32 %v24, 32
    %v29 = vadd.s32 %v24, 40
    %v30 = vadd.s32 %v24, 48
    %v31 = vld [vmem:[%s1] sm:$0x3]
    %v32 = vlaneseq
    %v33 = vshrl.u32 %v32, 7
    %v34 = vsub.s32 0, %v33
    %v35 = vrot.slane %v31, %v34
    %v36 = vlaneseq
    %v37 = vshrl.u32 %v36, 7
    %v38 = vsub.s32 1, %v37
    %v39 = vrot.slane %v31, %v38
    %vm40 = vcmp.eq.s32.totalorder %v24, %v35
    %vm41 = vcmp.eq.s32.totalorder %v24, %v39
    %vm42 = vcmp.eq.s32.totalorder %v25, %v35
    %vm43 = vcmp.eq.s32.totalorder %v25, %v39
    %vm44 = vcmp.eq.s32.totalorder %v26, %v35
    %vm45 = vcmp.eq.s32.totalorder %v26, %v39
    %vm46 = vcmp.eq.s32.totalorder %v27, %v35
    %vm47 = vcmp.eq.s32.totalorder %v27, %v39
    %vm48 = vcmp.eq.s32.totalorder %v28, %v35
    %vm49 = vcmp.eq.s32.totalorder %v28, %v39
    %vm50 = vcmp.eq.s32.totalorder %v29, %v35
    %vm51 = vcmp.eq.s32.totalorder %v29, %v39
    %vm52 = vcmp.eq.s32.totalorder %v30, %v35
    %vm53 = vcmp.eq.s32.totalorder %v30, %v39
    %v54 = vsel %vm40, 1, 0
    %v55 = vsel %vm41, 1, 0
    %v56 = vsel %vm42, 1, 0
    %v57 = vsel %vm43, 1, 0
    %v58 = vsel %vm44, 1, 0
    %v59 = vsel %vm45, 1, 0
    %v60 = vsel %vm46, 1, 0
    %v61 = vsel %vm47, 1, 0
    %v62 = vsel %vm48, 1, 0
    %v63 = vsel %vm49, 1, 0
    %v64 = vsel %vm50, 1, 0
    %v65 = vsel %vm51, 1, 0
    %v66 = vsel %vm52, 1, 0
    %v67 = vsel %vm53, 1, 0
    %v68 = vcvt.s32.f32 %v54
    %v69 = vcvt.s32.f32 %v55
    %v70 = vcvt.s32.f32 %v56
    %v71 = vcvt.s32.f32 %v57
    %v72 = vcvt.s32.f32 %v58
    %v73 = vcvt.s32.f32 %v59
    %v74 = vcvt.s32.f32 %v60
    %v75 = vcvt.s32.f32 %v61
    %v76 = vcvt.s32.f32 %v62
    %v77 = vcvt.s32.f32 %v63
    %v78 = vcvt.s32.f32 %v64
    %v79 = vcvt.s32.f32 %v65
    %v80 = vcvt.s32.f32 %v66
    %v81 = vcvt.s32.f32 %v67
    %v82 = vld [vmem:[#allocation2] sm:$0xf]
    %vm83 = vcmask 400384
    %v85 = vsel %vm83, %v82, 0
    %vm87 = vcmask 1040384
    %v89 = vsel %vm87, %v80, 0
    %v92 = vsel %vm87, %v81, 0
    %v94 = vand.u32 %v69, 4294901760
    %95 = vmatprep.subr.mxu0 %v94
    %v96 = vand.u32 %v68, 4294901760
    %97 = vmatpush1.msra.mxu0 %v96
    %v98 = vand.u32 %v71, 4294901760
    %99 = vmatprep.subr.mxu0 %v98
    %v100 = vand.u32 %v70, 4294901760
    %101 = vmatpush1.msra.mxu0 %v100
    %v102 = vand.u32 %v73, 4294901760
    %103 = vmatprep.subr.mxu0 %v102
    %v104 = vand.u32 %v72, 4294901760
    %105 = vmatpush1.msra.mxu0 %v104
    %v106 = vand.u32 %v75, 4294901760
    %107 = vmatprep.subr.mxu0 %v106
    %v108 = vand.u32 %v74, 4294901760
    %109 = vmatpush1.msra.mxu0 %v108
    %v110 = vand.u32 %v77, 4294901760
    %111 = vmatprep.subr.mxu0 %v110
    %v112 = vand.u32 %v76, 4294901760
    %113 = vmatpush1.msra.mxu0 %v112
    %v114 = vand.u32 %v79, 4294901760
    %115 = vmatprep.subr.mxu0 %v114
    %v116 = vand.u32 %v78, 4294901760
    %117 = vmatpush1.msra.mxu0 %v116
    %v118 = vand.u32 %v92, 4294901760
    %119 = vmatprep.subr.mxu0 %v118
    %v120 = vand.u32 %v89, 4294901760
    %121 = vmatpush1.msra.mxu0 %v120
    %122 = vmatprep.subr.mxu0 0.0
    %123 = vmatpush1.msra.mxu0 0.0
    %124 = vmatprep.subr.mxu0 0.0
    %125 = vmatpush1.msra.mxu0 0.0
    %126 = vmatprep.subr.mxu0 0.0
    %127 = vmatpush1.msra.mxu0 0.0
    %128 = vmatprep.subr.mxu0 0.0
    %129 = vmatpush1.msra.mxu0 0.0
    %130 = vmatprep.subr.mxu0 0.0
    %131 = vmatpush1.msra.mxu0 0.0
    %132 = vmatprep.subr.mxu0 0.0
    %133 = vmatpush1.msra.mxu0 0.0
    %134 = vmatprep.subr.mxu0 0.0
    %135 = vmatpush1.msra.mxu0 0.0
    %136 = vmatprep.subr.mxu0 0.0
    %137 = vmatpush1.msra.mxu0 0.0
    %138 = vmatprep.subr.mxu0 0.0
    %139 = vmatpush1.msra.mxu0 0.0
    %140 = vmatprep.subr.mxu0 0.0
    %141 = vmatpush1.msra.mxu0 0.0
    %142 = vmatprep.subr.mxu0 0.0
    %143 = vmatpush1.msra.mxu0 0.0
    %144 = vmatprep.subr.mxu0 0.0
    %145 = vmatpush1.msra.mxu0 0.0
    %146 = vmatprep.subr.mxu0 0.0
    %147 = vmatpush1.msra.mxu0 0.0
    %148 = vmatprep.subr.mxu0 0.0
    %149 = vmatpush1.msra.mxu0 0.0
    %150 = vmatprep.subr.mxu0 0.0
    %151 = vmatpush1.msra.mxu0 0.0
    %152 = vmatprep.subr.mxu0 0.0
    %153 = vmatpush1.msra.mxu0 0.0
    %154 = vmatprep.subr.mxu0 0.0
    %155 = vmatpush1.msra.mxu0 0.0
    %156 = vmatprep.subr.mxu0 0.0
    %157 = vmatpush1.msra.mxu0 0.0
    %158 = vmatprep.subr.mxu0 0.0
    %159 = vmatpush1.msra.mxu0 0.0
    %160 = vmatprep.subr.mxu0 0.0
    %161 = vmatpush1.msra.mxu0 0.0
    %162 = vmatprep.subr.mxu0 0.0
    %163 = vmatpush1.msra.mxu0 0.0
    %164 = vmatprep.subr.mxu0 0.0
    %165 = vmatpush1.msra.mxu0 0.0
    %166 = vmatprep.subr.mxu0 0.0
    %167 = vmatpush1.msra.mxu0 0.0
    %168 = vmatprep.subr.mxu0 0.0
    %169 = vmatpush1.msra.mxu0 0.0
    %170 = vmatprep.subr.mxu0 0.0
    %171 = vmatpush1.msra.mxu0 0.0
    %172 = vmatprep.mubr.f32.mxu0 0.0
    %v173 = vand.u32 %v85, 4294901760
    %v174 = vsub.f32 %v85, %v173
    %v175 = vand.u32 %v174, 4294901760
    %v176 = vsub.f32 %v174, %v175
    %v177 = vand.u32 %v176, 4294901760
    %178 = vmatmul.mubr.f32.gmra.mrb[0].mxu0 %v177
    %v179 = vpop.f32.mrb[0].mxu0
    %v180 = vadd.f32 0.0, %v179
    %v181 = vpop.f32.mrb[0].mxu0
    %v182 = vadd.f32 0.0, %v181
    %183 = vdwg.mxu0
    %v184 = vand.u32 %v69, 4294901760
    %v185 = vsub.f32 %v69, %v184
    %v186 = vand.u32 %v185, 4294901760
    %v187 = vsub.f32 %v185, %v186
    %v188 = vand.u32 %v187, 4294901760
    %189 = vmatprep.subr.mxu0 %v188
    %v190 = vand.u32 %v68, 4294901760
    %v191 = vsub.f32 %v68, %v190
    %v192 = vand.u32 %v191, 4294901760
    %v193 = vsub.f32 %v191, %v192
    %v194 = vand.u32 %v193, 4294901760
    %195 = vmatpush1.msra.mxu0 %v194
    %v196 = vand.u32 %v71, 4294901760
    %v197 = vsub.f32 %v71, %v196
    %v198 = vand.u32 %v197, 4294901760
    %v199 = vsub.f32 %v197, %v198
    %v200 = vand.u32 %v199, 4294901760
    %201 = vmatprep.subr.mxu0 %v200
    %v202 = vand.u32 %v70, 4294901760
    %v203 = vsub.f32 %v70, %v202
    %v204 = vand.u32 %v203, 4294901760
    %v205 = vsub.f32 %v203, %v204
    %v206 = vand.u32 %v205, 4294901760
    %207 = vmatpush1.msra.mxu0 %v206
    %v208 = vand.u32 %v73, 4294901760
    %v209 = vsub.f32 %v73, %v208
    %v210 = vand.u32 %v209, 4294901760
    %v211 = vsub.f32 %v209, %v210
    %v212 = vand.u32 %v211, 4294901760
    %213 = vmatprep.subr.mxu0 %v212
    %v214 = vand.u32 %v72, 4294901760
    %v215 = vsub.f32 %v72, %v214
    %v216 = vand.u32 %v215, 4294901760
    %v217 = vsub.f32 %v215, %v216
    %v218 = vand.u32 %v217, 4294901760
    %219 = vmatpush1.msra.mxu0 %v218
    %v220 = vand.u32 %v75, 4294901760
    %v221 = vsub.f32 %v75, %v220
    %v222 = vand.u32 %v221, 4294901760
    %v223 = vsub.f32 %v221, %v222
    %v224 = vand.u32 %v223, 4294901760
    %225 = vmatprep.subr.mxu0 %v224
    %v226 = vand.u32 %v74, 4294901760
    %v227 = vsub.f32 %v74, %v226
    %v228 = vand.u32 %v227, 4294901760
    %v229 = vsub.f32 %v227, %v228
    %v230 = vand.u32 %v229, 4294901760
    %231 = vmatpush1.msra.mxu0 %v230
    %v232 = vand.u32 %v77, 4294901760
    %v233 = vsub.f32 %v77, %v232
    %v234 = vand.u32 %v233, 4294901760
    %v235 = vsub.f32 %v233, %v234
    %v236 = vand.u32 %v235, 4294901760
    %237 = vmatprep.subr.mxu0 %v236
    %v238 = vand.u32 %v76, 4294901760
    %v239 = vsub.f32 %v76, %v238
    %v240 = vand.u32 %v239, 4294901760
    %v241 = vsub.f32 %v239, %v240
    %v242 = vand.u32 %v241, 4294901760
    %243 = vmatpush1.msra.mxu0 %v242
    %v244 = vand.u32 %v79, 4294901760
    %v245 = vsub.f32 %v79, %v244
    %v246 = vand.u32 %v245, 4294901760
    %v247 = vsub.f32 %v245, %v246
    %v248 = vand.u32 %v247, 4294901760
    %249 = vmatprep.subr.mxu0 %v248
    %v250 = vand.u32 %v78, 4294901760
    %v251 = vsub.f32 %v78, %v250
    %v252 = vand.u32 %v251, 4294901760
    %v253 = vsub.f32 %v251, %v252
    %v254 = vand.u32 %v253, 4294901760
    %255 = vmatpush1.msra.mxu0 %v254
    %v256 = vand.u32 %v92, 4294901760
    %v257 = vsub.f32 %v92, %v256
    %v258 = vand.u32 %v257, 4294901760
    %v259 = vsub.f32 %v257, %v258
    %v260 = vand.u32 %v259, 4294901760
    %261 = vmatprep.subr.mxu0 %v260
    %v262 = vand.u32 %v89, 4294901760
    %v263 = vsub.f32 %v89, %v262
    %v264 = vand.u32 %v263, 4294901760
    %v265 = vsub.f32 %v263, %v264
    %v266 = vand.u32 %v265, 4294901760
    %267 = vmatpush1.msra.mxu0 %v266
    %268 = vmatprep.subr.mxu0 0.0
    %269 = vmatpush1.msra.mxu0 0.0
    %270 = vmatprep.subr.mxu0 0.0
    %271 = vmatpush1.msra.mxu0 0.0
    %272 = vmatprep.subr.mxu0 0.0
    %273 = vmatpush1.msra.mxu0 0.0
    %274 = vmatprep.subr.mxu0 0.0
    %275 = vmatpush1.msra.mxu0 0.0
    %276 = vmatprep.subr.mxu0 0.0
    %277 = vmatpush1.msra.mxu0 0.0
    %278 = vmatprep.subr.mxu0 0.0
    %279 = vmatpush1.msra.mxu0 0.0
    %280 = vmatprep.subr.mxu0 0.0
    %281 = vmatpush1.msra.mxu0 0.0
    %282 = vmatprep.subr.mxu0 0.0
    %283 = vmatpush1.msra.mxu0 0.0
    %284 = vmatprep.subr.mxu0 0.0
    %285 = vmatpush1.msra.mxu0 0.0
    %286 = vmatprep.subr.mxu0 0.0
    %287 = vmatpush1.msra.mxu0 0.0
    %288 = vmatprep.subr.mxu0 0.0
    %289 = vmatpush1.msra.mxu0 0.0
    %290 = vmatprep.subr.mxu0 0.0
    %291 = vmatpush1.msra.mxu0 0.0
    %292 = vmatprep.subr.mxu0 0.0
    %293 = vmatpush1.msra.mxu0 0.0
    %294 = vmatprep.subr.mxu0 0.0
    %295 = vmatpush1.msra.mxu0 0.0
    %296 = vmatprep.subr.mxu0 0.0
    %297 = vmatpush1.msra.mxu0 0.0
    %298 = vmatprep.subr.mxu0 0.0
    %299 = vmatpush1.msra.mxu0 0.0
    %300 = vmatprep.subr.mxu0 0.0
    %301 = vmatpush1.msra.mxu0 0.0
    %302 = vmatprep.subr.mxu0 0.0
    %303 = vmatpush1.msra.mxu0 0.0
    %304 = vmatprep.subr.mxu0 0.0
    %305 = vmatpush1.msra.mxu0 0.0
    %306 = vmatprep.subr.mxu0 0.0
    %307 = vmatpush1.msra.mxu0 0.0
    %308 = vmatprep.subr.mxu0 0.0
    %309 = vmatpush1.msra.mxu0 0.0
    %310 = vmatprep.subr.mxu0 0.0
    %311 = vmatpush1.msra.mxu0 0.0
    %312 = vmatprep.subr.mxu0 0.0
    %313 = vmatpush1.msra.mxu0 0.0
    %314 = vmatprep.subr.mxu0 0.0
    %315 = vmatpush1.msra.mxu0 0.0
    %316 = vmatprep.subr.mxu0 0.0
    %317 = vmatpush1.msra.mxu0 0.0
    %318 = vmatprep.mubr.f32.mxu0 0.0
    %v319 = vand.u32 %v85, 4294901760
    %320 = vmatmul.mubr.f32.gmra.mrb[0].mxu0 %v319
    %v321 = vpop.f32.mrb[0].mxu0
    %v322 = vadd.f32 %v180, %v321
    %v323 = vpop.f32.mrb[0].mxu0
    %v324 = vadd.f32 %v182, %v323
    %325 = vdwg.mxu0
    %v326 = vand.u32 %v69, 4294901760
    %v327 = vsub.f32 %v69, %v326
    %328 = vmatprep.subr.mxu0 %v327
    %v329 = vand.u32 %v68, 4294901760
    %v330 = vsub.f32 %v68, %v329
    %331 = vmatpush1.msra.mxu0 %v330
    %v332 = vand.u32 %v71, 4294901760
    %v333 = vsub.f32 %v71, %v332
    %334 = vmatprep.subr.mxu0 %v333
    %v335 = vand.u32 %v70, 4294901760
    %v336 = vsub.f32 %v70, %v335
    %337 = vmatpush1.msra.mxu0 %v336
    %v338 = vand.u32 %v73, 4294901760
    %v339 = vsub.f32 %v73, %v338
    %340 = vmatprep.subr.mxu0 %v339
    %v341 = vand.u32 %v72, 4294901760
    %v342 = vsub.f32 %v72, %v341
    %343 = vmatpush1.msra.mxu0 %v342
    %v344 = vand.u32 %v75, 4294901760
    %v345 = vsub.f32 %v75, %v344
    %346 = vmatprep.subr.mxu0 %v345
    %v347 = vand.u32 %v74, 4294901760
    %v348 = vsub.f32 %v74, %v347
    %349 = vmatpush1.msra.mxu0 %v348
    %v350 = vand.u32 %v77, 4294901760
    %v351 = vsub.f32 %v77, %v350
    %352 = vmatprep.subr.mxu0 %v351
    %v353 = vand.u32 %v76, 4294901760
    %v354 = vsub.f32 %v76, %v353
    %355 = vmatpush1.msra.mxu0 %v354
    %v356 = vand.u32 %v79, 4294901760
    %v357 = vsub.f32 %v79, %v356
    %358 = vmatprep.subr.mxu0 %v357
    %v359 = vand.u32 %v78, 4294901760
    %v360 = vsub.f32 %v78, %v359
    %361 = vmatpush1.msra.mxu0 %v360
    %v362 = vand.u32 %v92, 4294901760
    %v363 = vsub.f32 %v92, %v362
    %364 = vmatprep.subr.mxu0 %v363
    %v365 = vand.u32 %v89, 4294901760
    %v366 = vsub.f32 %v89, %v365
    %367 = vmatpush1.msra.mxu0 %v366
    %368 = vmatprep.subr.mxu0 0.0
    %369 = vmatpush1.msra.mxu0 0.0
    %370 = vmatprep.subr.mxu0 0.0
    %371 = vmatpush1.msra.mxu0 0.0
    %372 = vmatprep.subr.mxu0 0.0
    %373 = vmatpush1.msra.mxu0 0.0
    %374 = vmatprep.subr.mxu0 0.0
    %375 = vmatpush1.msra.mxu0 0.0
    %376 = vmatprep.subr.mxu0 0.0
    %377 = vmatpush1.msra.mxu0 0.0
    %378 = vmatprep.subr.mxu0 0.0
    %379 = vmatpush1.msra.mxu0 0.0
    %380 = vmatprep.subr.mxu0 0.0
    %381 = vmatpush1.msra.mxu0 0.0
    %382 = vmatprep.subr.mxu0 0.0
    %383 = vmatpush1.msra.mxu0 0.0
    %384 = vmatprep.subr.mxu0 0.0
    %385 = vmatpush1.msra.mxu0 0.0
    %386 = vmatprep.subr.mxu0 0.0
    %387 = vmatpush1.msra.mxu0 0.0
    %388 = vmatprep.subr.mxu0 0.0
    %389 = vmatpush1.msra.mxu0 0.0
    %390 = vmatprep.subr.mxu0 0.0
    %391 = vmatpush1.msra.mxu0 0.0
    %392 = vmatprep.subr.mxu0 0.0
    %393 = vmatpush1.msra.mxu0 0.0
    %394 = vmatprep.subr.mxu0 0.0
    %395 = vmatpush1.msra.mxu0 0.0
    %396 = vmatprep.subr.mxu0 0.0
    %397 = vmatpush1.msra.mxu0 0.0
    %398 = vmatprep.subr.mxu0 0.0
    %399 = vmatpush1.msra.mxu0 0.0
    %400 = vmatprep.subr.mxu0 0.0
    %401 = vmatpush1.msra.mxu0 0.0
    %402 = vmatprep.subr.mxu0 0.0
    %403 = vmatpush1.msra.mxu0 0.0
    %404 = vmatprep.subr.mxu0 0.0
    %405 = vmatpush1.msra.mxu0 0.0
    %406 = vmatprep.subr.mxu0 0.0
    %407 = vmatpush1.msra.mxu0 0.0
    %408 = vmatprep.subr.mxu0 0.0
    %409 = vmatpush1.msra.mxu0 0.0
    %410 = vmatprep.subr.mxu0 0.0
    %411 = vmatpush1.msra.mxu0 0.0
    %412 = vmatprep.subr.mxu0 0.0
    %413 = vmatpush1.msra.mxu0 0.0
    %414 = vmatprep.subr.mxu0 0.0
    %415 = vmatpush1.msra.mxu0 0.0
    %416 = vmatprep.subr.mxu0 0.0
    %417 = vmatpush1.msra.mxu0 0.0
    %418 = vmatprep.mubr.f32.mxu0 0.0
    %v419 = vand.u32 %v85, 4294901760
    %v420 = vsub.f32 %v85, %v419
    %421 = vmatmul.mubr.f32.gmra.mrb[0].mxu0 %v420
    %v422 = vpop.f32.mrb[0].mxu0
    %v423 = vadd.f32 %v322, %v422
    %v424 = vpop.f32.mrb[0].mxu0
    %v425 = vadd.f32 %v324, %v424
    %426 = vdwg.mxu0
    %v427 = vand.u32 %v69, 4294901760
    %428 = vmatprep.subr.mxu0 %v427
    %v429 = vand.u32 %v68, 4294901760
    %430 = vmatpush1.msra.mxu0 %v429
    %v431 = vand.u32 %v71, 4294901760
    %432 = vmatprep.subr.mxu0 %v431
    %v433 = vand.u32 %v70, 4294901760
    %434 = vmatpush1.msra.mxu0 %v433
    %v435 = vand.u32 %v73, 4294901760
    %436 = vmatprep.subr.mxu0 %v435
    %v437 = vand.u32 %v72, 4294901760
    %438 = vmatpush1.msra.mxu0 %v437
    %v439 = vand.u32 %v75, 4294901760
    %440 = vmatprep.subr.mxu0 %v439
    %v441 = vand.u32 %v74, 4294901760
    %442 = vmatpush1.msra.mxu0 %v441
    %v443 = vand.u32 %v77, 4294901760
    %444 = vmatprep.subr.mxu0 %v443
    %v445 = vand.u32 %v76, 4294901760
    %446 = vmatpush1.msra.mxu0 %v445
    %v447 = vand.u32 %v79, 4294901760
    %448 = vmatprep.subr.mxu0 %v447
    %v449 = vand.u32 %v78, 4294901760
    %450 = vmatpush1.msra.mxu0 %v449
    %v451 = vand.u32 %v92, 4294901760
    %452 = vmatprep.subr.mxu0 %v451
    %v453 = vand.u32 %v89, 4294901760
    %454 = vmatpush1.msra.mxu0 %v453
    %455 = vmatprep.subr.mxu0 0.0
    %456 = vmatpush1.msra.mxu0 0.0
    %457 = vmatprep.subr.mxu0 0.0
    %458 = vmatpush1.msra.mxu0 0.0
    %459 = vmatprep.subr.mxu0 0.0
    %460 = vmatpush1.msra.mxu0 0.0
    %461 = vmatprep.subr.mxu0 0.0
    %462 = vmatpush1.msra.mxu0 0.0
    %463 = vmatprep.subr.mxu0 0.0
    %464 = vmatpush1.msra.mxu0 0.0
    %465 = vmatprep.subr.mxu0 0.0
    %466 = vmatpush1.msra.mxu0 0.0
    %467 = vmatprep.subr.mxu0 0.0
    %468 = vmatpush1.msra.mxu0 0.0
    %469 = vmatprep.subr.mxu0 0.0
    %470 = vmatpush1.msra.mxu0 0.0
    %471 = vmatprep.subr.mxu0 0.0
    %472 = vmatpush1.msra.mxu0 0.0
    %473 = vmatprep.subr.mxu0 0.0
    %474 = vmatpush1.msra.mxu0 0.0
    %475 = vmatprep.subr.mxu0 0.0
    %476 = vmatpush1.msra.mxu0 0.0
    %477 = vmatprep.subr.mxu0 0.0
    %478 = vmatpush1.msra.mxu0 0.0
    %479 = vmatprep.subr.mxu0 0.0
    %480 = vmatpush1.msra.mxu0 0.0
    %481 = vmatprep.subr.mxu0 0.0
    %482 = vmatpush1.msra.mxu0 0.0
    %483 = vmatprep.subr.mxu0 0.0
    %484 = vmatpush1.msra.mxu0 0.0
    %485 = vmatprep.subr.mxu0 0.0
    %486 = vmatpush1.msra.mxu0 0.0
    %487 = vmatprep.subr.mxu0 0.0
    %488 = vmatpush1.msra.mxu0 0.0
    %489 = vmatprep.subr.mxu0 0.0
    %490 = vmatpush1.msra.mxu0 0.0
    %491 = vmatprep.subr.mxu0 0.0
    %492 = vmatpush1.msra.mxu0 0.0
    %493 = vmatprep.subr.mxu0 0.0
    %494 = vmatpush1.msra.mxu0 0.0
    %495 = vmatprep.subr.mxu0 0.0
    %496 = vmatpush1.msra.mxu0 0.0
    %497 = vmatprep.subr.mxu0 0.0
    %498 = vmatpush1.msra.mxu0 0.0
    %499 = vmatprep.subr.mxu0 0.0
    %500 = vmatpush1.msra.mxu0 0.0
    %501 = vmatprep.subr.mxu0 0.0
    %502 = vmatpush1.msra.mxu0 0.0
    %503 = vmatprep.subr.mxu0 0.0
    %504 = vmatpush1.msra.mxu0 0.0
    %505 = vmatprep.mubr.f32.mxu0 0.0
    %v506 = vand.u32 %v85, 4294901760
    %v507 = vsub.f32 %v85, %v506
    %v508 = vand.u32 %v507, 4294901760
    %509 = vmatmul.mubr.f32.gmra.mrb[0].mxu0 %v508
    %v510 = vpop.f32.mrb[0].mxu0
    %v511 = vadd.f32 %v423, %v510
    %v512 = vpop.f32.mrb[0].mxu0
    %v513 = vadd.f32 %v425, %v512
    %514 = vdwg.mxu0
    %v515 = vand.u32 %v69, 4294901760
    %v516 = vsub.f32 %v69, %v515
    %v517 = vand.u32 %v516, 4294901760
    %518 = vmatprep.subr.mxu0 %v517
    %v519 = vand.u32 %v68, 4294901760
    %v520 = vsub.f32 %v68, %v519
    %v521 = vand.u32 %v520, 4294901760
    %522 = vmatpush1.msra.mxu0 %v521
    %v523 = vand.u32 %v71, 4294901760
    %v524 = vsub.f32 %v71, %v523
    %v525 = vand.u32 %v524, 4294901760
    %526 = vmatprep.subr.mxu0 %v525
    %v527 = vand.u32 %v70, 4294901760
    %v528 = vsub.f32 %v70, %v527
    %v529 = vand.u32 %v528, 4294901760
    %530 = vmatpush1.msra.mxu0 %v529
    %v531 = vand.u32 %v73, 4294901760
    %v532 = vsub.f32 %v73, %v531
    %v533 = vand.u32 %v532, 4294901760
    %534 = vmatprep.subr.mxu0 %v533
    %v535 = vand.u32 %v72, 4294901760
    %v536 = vsub.f32 %v72, %v535
    %v537 = vand.u32 %v536, 4294901760
    %538 = vmatpush1.msra.mxu0 %v537
    %v539 = vand.u32 %v75, 4294901760
    %v540 = vsub.f32 %v75, %v539
    %v541 = vand.u32 %v540, 4294901760
    %542 = vmatprep.subr.mxu0 %v541
    %v543 = vand.u32 %v74, 4294901760
    %v544 = vsub.f32 %v74, %v543
    %v545 = vand.u32 %v544, 4294901760
    %546 = vmatpush1.msra.mxu0 %v545
    %v547 = vand.u32 %v77, 4294901760
    %v548 = vsub.f32 %v77, %v547
    %v549 = vand.u32 %v548, 4294901760
    %550 = vmatprep.subr.mxu0 %v549
    %v551 = vand.u32 %v76, 4294901760
    %v552 = vsub.f32 %v76, %v551
    %v553 = vand.u32 %v552, 4294901760
    %554 = vmatpush1.msra.mxu0 %v553
    %v555 = vand.u32 %v79, 4294901760
    %v556 = vsub.f32 %v79, %v555
    %v557 = vand.u32 %v556, 4294901760
    %558 = vmatprep.subr.mxu0 %v557
    %v559 = vand.u32 %v78, 4294901760
    %v560 = vsub.f32 %v78, %v559
    %v561 = vand.u32 %v560, 4294901760
    %562 = vmatpush1.msra.mxu0 %v561
    %v563 = vand.u32 %v92, 4294901760
    %v564 = vsub.f32 %v92, %v563
    %v565 = vand.u32 %v564, 4294901760
    %566 = vmatprep.subr.mxu0 %v565
    %v567 = vand.u32 %v89, 4294901760
    %v568 = vsub.f32 %v89, %v567
    %v569 = vand.u32 %v568, 4294901760
    %570 = vmatpush1.msra.mxu0 %v569
    %571 = vmatprep.subr.mxu0 0.0
    %572 = vmatpush1.msra.mxu0 0.0
    %573 = vmatprep.subr.mxu0 0.0
    %574 = vmatpush1.msra.mxu0 0.0
    %575 = vmatprep.subr.mxu0 0.0
    %576 = vmatpush1.msra.mxu0 0.0
    %577 = vmatprep.subr.mxu0 0.0
    %578 = vmatpush1.msra.mxu0 0.0
    %579 = vmatprep.subr.mxu0 0.0
    %580 = vmatpush1.msra.mxu0 0.0
    %581 = vmatprep.subr.mxu0 0.0
    %582 = vmatpush1.msra.mxu0 0.0
    %583 = vmatprep.subr.mxu0 0.0
    %584 = vmatpush1.msra.mxu0 0.0
    %585 = vmatprep.subr.mxu0 0.0
    %586 = vmatpush1.msra.mxu0 0.0
    %587 = vmatprep.subr.mxu0 0.0
    %588 = vmatpush1.msra.mxu0 0.0
    %589 = vmatprep.subr.mxu0 0.0
    %590 = vmatpush1.msra.mxu0 0.0
    %591 = vmatprep.subr.mxu0 0.0
    %592 = vmatpush1.msra.mxu0 0.0
    %593 = vmatprep.subr.mxu0 0.0
    %594 = vmatpush1.msra.mxu0 0.0
    %595 = vmatprep.subr.mxu0 0.0
    %596 = vmatpush1.msra.mxu0 0.0
    %597 = vmatprep.subr.mxu0 0.0
    %598 = vmatpush1.msra.mxu0 0.0
    %599 = vmatprep.subr.mxu0 0.0
    %600 = vmatpush1.msra.mxu0 0.0
    %601 = vmatprep.subr.mxu0 0.0
    %602 = vmatpush1.msra.mxu0 0.0
    %603 = vmatprep.subr.mxu0 0.0
    %604 = vmatpush1.msra.mxu0 0.0
    %605 = vmatprep.subr.mxu0 0.0
    %606 = vmatpush1.msra.mxu0 0.0
    %607 = vmatprep.subr.mxu0 0.0
    %608 = vmatpush1.msra.mxu0 0.0
    %609 = vmatprep.subr.mxu0 0.0
    %610 = vmatpush1.msra.mxu0 0.0
    %611 = vmatprep.subr.mxu0 0.0
    %612 = vmatpush1.msra.mxu0 0.0
    %613 = vmatprep.subr.mxu0 0.0
    %614 = vmatpush1.msra.mxu0 0.0
    %615 = vmatprep.subr.mxu0 0.0
    %616 = vmatpush1.msra.mxu0 0.0
    %617 = vmatprep.subr.mxu0 0.0
    %618 = vmatpush1.msra.mxu0 0.0
    %619 = vmatprep.subr.mxu0 0.0
    %620 = vmatpush1.msra.mxu0 0.0
    %621 = vmatprep.mubr.f32.mxu0 0.0
    %v622 = vand.u32 %v85, 4294901760
    %623 = vmatmul.mubr.f32.gmra.mrb[0].mxu0 %v622
    %v624 = vpop.f32.mrb[0].mxu0
    %v625 = vadd.f32 %v511, %v624
    %v626 = vpop.f32.mrb[0].mxu0
    %v627 = vadd.f32 %v513, %v626
    %628 = vdwg.mxu0
    %v629 = vand.u32 %v69, 4294901760
    %630 = vmatprep.subr.mxu0 %v629
    %v631 = vand.u32 %v68, 4294901760
    %632 = vmatpush1.msra.mxu0 %v631
    %v633 = vand.u32 %v71, 4294901760
    %634 = vmatprep.subr.mxu0 %v633
    %v635 = vand.u32 %v70, 4294901760
    %636 = vmatpush1.msra.mxu0 %v635
    %v637 = vand.u32 %v73, 4294901760
    %638 = vmatprep.subr.mxu0 %v637
    %v639 = vand.u32 %v72, 4294901760
    %640 = vmatpush1.msra.mxu0 %v639
    %v641 = vand.u32 %v75, 4294901760
    %642 = vmatprep.subr.mxu0 %v641
    %v643 = vand.u32 %v74, 4294901760
    %644 = vmatpush1.msra.mxu0 %v643
    %v645 = vand.u32 %v77, 4294901760
    %646 = vmatprep.subr.mxu0 %v645
    %v647 = vand.u32 %v76, 4294901760
    %648 = vmatpush1.msra.mxu0 %v647
    %v649 = vand.u32 %v79, 4294901760
    %650 = vmatprep.subr.mxu0 %v649
    %v651 = vand.u32 %v78, 4294901760
    %652 = vmatpush1.msra.mxu0 %v651
    %v653 = vand.u32 %v92, 4294901760
    %654 = vmatprep.subr.mxu0 %v653
    %v655 = vand.u32 %v89, 4294901760
    %656 = vmatpush1.msra.mxu0 %v655
    %657 = vmatprep.subr.mxu0 0.0
    %658 = vmatpush1.msra.mxu0 0.0
    %659 = vmatprep.subr.mxu0 0.0
    %660 = vmatpush1.msra.mxu0 0.0
    %661 = vmatprep.subr.mxu0 0.0
    %662 = vmatpush1.msra.mxu0 0.0
    %663 = vmatprep.subr.mxu0 0.0
    %664 = vmatpush1.msra.mxu0 0.0
    %665 = vmatprep.subr.mxu0 0.0
    %666 = vmatpush1.msra.mxu0 0.0
    %667 = vmatprep.subr.mxu0 0.0
    %668 = vmatpush1.msra.mxu0 0.0
    %669 = vmatprep.subr.mxu0 0.0
    %670 = vmatpush1.msra.mxu0 0.0
    %671 = vmatprep.subr.mxu0 0.0
    %672 = vmatpush1.msra.mxu0 0.0
    %673 = vmatprep.subr.mxu0 0.0
    %674 = vmatpush1.msra.mxu0 0.0
    %675 = vmatprep.subr.mxu0 0.0
    %676 = vmatpush1.msra.mxu0 0.0
    %677 = vmatprep.subr.mxu0 0.0
    %678 = vmatpush1.msra.mxu0 0.0
    %679 = vmatprep.subr.mxu0 0.0
    %680 = vmatpush1.msra.mxu0 0.0
    %681 = vmatprep.subr.mxu0 0.0
    %682 = vmatpush1.msra.mxu0 0.0
    %683 = vmatprep.subr.mxu0 0.0
    %684 = vmatpush1.msra.mxu0 0.0
    %685 = vmatprep.subr.mxu0 0.0
    %686 = vmatpush1.msra.mxu0 0.0
    %687 = vmatprep.subr.mxu0 0.0
    %688 = vmatpush1.msra.mxu0 0.0
    %689 = vmatprep.subr.mxu0 0.0
    %690 = vmatpush1.msra.mxu0 0.0
    %691 = vmatprep.subr.mxu0 0.0
    %692 = vmatpush1.msra.mxu0 0.0
    %693 = vmatprep.subr.mxu0 0.0
    %694 = vmatpush1.msra.mxu0 0.0
    %695 = vmatprep.subr.mxu0 0.0
    %696 = vmatpush1.msra.mxu0 0.0
    %697 = vmatprep.subr.mxu0 0.0
    %698 = vmatpush1.msra.mxu0 0.0
    %699 = vmatprep.subr.mxu0 0.0
    %700 = vmatpush1.msra.mxu0 0.0
    %701 = vmatprep.subr.mxu0 0.0
    %702 = vmatpush1.msra.mxu0 0.0
    %703 = vmatprep.subr.mxu0 0.0
    %704 = vmatpush1.msra.mxu0 0.0
    %705 = vmatprep.subr.mxu0 0.0
    %706 = vmatpush1.msra.mxu0 0.0
    %707 = vmatprep.mubr.f32.mxu0 0.0
    %v708 = vand.u32 %v85, 4294901760
    %709 = vmatmul.mubr.f32.gmra.mrb[0].mxu0 %v708
    %v710 = vpop.f32.mrb[0].mxu0
    %v711 = vadd.f32 %v625, %v710
    %v712 = vpop.f32.mrb[0].mxu0
    %v713 = vadd.f32 %v627, %v712
    %714 = vdwg.mxu0
    %v717 = vcombine.low %v711, %v713
    %719 = vst [vmem:[%s2] sm:$0xff] %v717
    // Predicated region
    $region14: #{_rpb_forward.2} parent=1 // pred_check
      _
    $region15: #{_rpb_forward.2} parent=1 // pred_check_branch
      %721 = sbr.rel (0) target = $region17
    $region16: #{_rpb_forward.2} parent=1 // pred_region
      _
    $region17: #{_rpb_forward.2} parent=1 // pred_fallthru
      _
    // Predicated region
    $region18: #{_rpb_forward.2} parent=1 // pred_check
      _
    $region19: #{_rpb_forward.2} parent=1 // pred_check_branch
      %723 = sbr.rel (0) target = $region21
    $region20: #{_rpb_forward.2} parent=1 // pred_region
      _
    $region21: #{_rpb_forward.2} parent=1 // pred_fallthru
      _
    %724 = vsyncpa [#allocation3], 1

</llo_original>
